<compile_context>
chip_gen: v7x
topology: tpu7x:2x2x1
jax: 0.10.0
libtpu: 0.0.40
codegen_flags: <defaults>
</compile_context>

<pallas_src>
import functools
import math

import jax
import jax.numpy as jnp
from jax import lax
from jax.experimental import pallas as pl
from jax.experimental.pallas import tpu as pltpu

_RCE_CLAMP = -math.log(1e-7)  # -log of the lower clamp applied to softmax probs


def _sce_kernel(x_ref, t_ref, out_ref, *, alpha, beta, n_total, tile_n):
    i = pl.program_id(0)

    x = x_ref[...].astype(jnp.float32)        # (tile_n, C) — cast in VMEM, not HBM
    t = t_ref[...]                            # (tile_n, 1) int32
    tn, c = x.shape

    # Row-wise logsumexp without materializing log_softmax.
    x_max = jnp.max(x, axis=-1, keepdims=True)              # (tile_n, 1)
    d = x - x_max                                            # shifted logits
    sum_exp = jnp.sum(jnp.exp(d), axis=-1, keepdims=True)    # (tile_n, 1)

    # d[t] via one-hot select on the shifted tile: one compare + one select + reduce.
    # TODO(synk): with a "parallel" grid the iota cannot be hoisted into a one-time
    # scratch init (no cross-core i==0); it is regenerated per tile (cheap VPU op).
    col = lax.broadcasted_iota(jnp.int32, (tn, c), 1)
    d_t = jnp.sum(jnp.where(col == t, d, 0.0), axis=-1, keepdims=True)

    nll = jnp.log(sum_exp) - d_t                             # per-row cross entropy
    # Reverse CE: -log(clamp(softmax(x)[t], 1e-7, 1)) == clip(nll, 0, -log(1e-7)).
    rce = jnp.clip(nll, 0.0, _RCE_CLAMP)
    loss = alpha * nll + beta * rce                          # (tile_n, 1)

    # Mask padded tail rows only at the end (garbage there may be NaN/Inf; the
    # select does not propagate it, so no full-tile pre-mask is needed).
    row = lax.broadcasted_iota(jnp.int32, (tn, 1), 0) + i * tile_n
    loss = jnp.where(row < n_total, loss, 0.0)

    # One partial sum per tile, broadcast into a lane-dense (8, 128) block; the
    # wrapper reduces the per-tile partials (numerically nicer than a serial RMW).
    partial = jnp.sum(loss)
    out_ref[...] = jnp.broadcast_to(partial, out_ref.shape).astype(jnp.float32)


def _vmem_capacity_bytes():
    try:
        info = pltpu.get_tpu_info()
        cap = getattr(info, "vmem_capacity_bytes", None)
        if cap:
            return int(cap)
    except Exception:
        pass
    return 64 * 1024 * 1024  # conservative fallback = v7x physical VMEM


def _choose_tile_n(n, c, itemsize, vmem_limit_bytes):
    # VMEM tiles pad the lane (last) axis to a multiple of 128, for the native-dtype
    # logits buffers, the (tile_n, 1) int32 target buffers AND the f32 temporaries.
    c_pad = ((c + 127) // 128) * 128
    per_row = (
        c_pad * 2 * itemsize      # double-buffered logits tile (native dtype)
        + 128 * 2 * 4             # double-buffered (tile_n, 1) int32 target tile
        + c_pad * 5 * 4           # ~5 full-tile f32 temps (cast, d, exp, cmp, select)
    )
    rows = (vmem_limit_bytes // 2) // per_row   # keep ~half the limit as headroom
    rows = min(rows, 8192)
    rows = min(rows, ((n + 7) // 8) * 8)        # never exceed (8-padded) N
    return max(8, (rows // 8) * 8)


def symmetric_cross_entropy(logits, targets, *, alpha=0.1, beta=1.0,
                            reduction="mean", tile_n=None):
    """alpha * CE(logits, targets) + beta * reverse-CE, reduced over the batch."""
    assert reduction in ("mean", "sum")
    # TODO(synk): reduction='none' (per-sample loss vector output) not implemented.
    n, c = logits.shape
    t2d = targets.astype(jnp.int32).reshape(n, 1)

    # Scoped-VMEM limit: 3/4 of physical, clamped to [32, 96] MiB
    # (v5e/v6e: 96 MiB of 128 MiB physical; v7x: 48 MiB of 64 MiB physical).
    vmem_cap = _vmem_capacity_bytes()
    vmem_limit = max(32 * 2**20, min((vmem_cap * 3) // 4, 96 * 2**20))

    itemsize = jnp.dtype(logits.dtype).itemsize
    if tile_n is None:
        tile_n = _choose_tile_n(n, c, itemsize, vmem_limit)
    num_tiles = pl.cdiv(n, tile_n)

    # TODO(synk): for tiny C (e.g. the module's num_classes=5) a lane-dense repack
    # ((N, C) -> (N/G, G*C) with G*C a multiple of 128) would cut the ~25x 128-lane
    # padding waste; it needs strided-lane group reductions and is left as follow-up.
    partials = pl.pallas_call(
        functools.partial(_sce_kernel, alpha=float(alpha), beta=float(beta),
                          n_total=n, tile_n=tile_n),
        out_shape=jax.ShapeDtypeStruct((num_tiles, 8, 128), jnp.float32),
        grid=(num_tiles,),
        in_specs=[
            pl.BlockSpec((tile_n, c), lambda i: (i, 0)),
            pl.BlockSpec((tile_n, 1), lambda i: (i, 0)),
        ],
        out_specs=pl.BlockSpec((1, 8, 128), lambda i: (i, 0, 0)),
        compiler_params=pltpu.CompilerParams(
            dimension_semantics=("parallel",),   # disjoint per-tile partial sums
            vmem_limit_bytes=int(vmem_limit),
        ),
    )(logits, t2d)

    total = jnp.sum(partials[:, 0, 0])
    if reduction == "mean":
        total = total / jnp.float32(n)
    return total


def _reference(logits, targets, alpha=0.1, beta=1.0, num_classes=None):
    """Per-sample alpha*CE + beta*RCE (pure JAX), mirroring the PyTorch module."""
    x = logits.astype(jnp.float32)
    if num_classes is None:
        num_classes = x.shape[-1]
    onehot = jax.nn.one_hot(targets, num_classes, dtype=jnp.float32)
    logp = jax.nn.log_softmax(x, axis=-1)
    ce = -jnp.sum(onehot * logp, axis=-1)
    p = jax.nn.softmax(x, axis=-1)
    rce = jnp.sum(-onehot * jnp.log(jnp.clip(p, 1e-7, 1.0)), axis=-1)
    return alpha * ce + beta * rce


if __name__ == "__main__":
    key = jax.random.PRNGKey(0)
    k1, k2, k3, k4 = jax.random.split(key, 4)

    # Case 1: module defaults (num_classes=5), small batch, single tile + partial tail.
    N1, C1 = 20, 5
    logits1 = 10.0 * jax.random.normal(k1, (N1, C1), dtype=jnp.float32)
    targets1 = jax.random.randint(k2, (N1,), 0, C1, dtype=jnp.int32)
    out1 = jax.block_until_ready(
        symmetric_cross_entropy(logits1, targets1, alpha=0.1, beta=1.0))
    ref1 = jnp.mean(_reference(logits1, targets1, alpha=0.1, beta=1.0))
    assert jnp.allclose(out1, ref1, atol=1e-5, rtol=1e-5), (out1, ref1)

    # Case 2: multi-tile "parallel" partial-sum path (3 tiles, 44-row tail),
    # both 'mean' and 'sum' reductions.
    N2, C2 = 300, 5
    logits2 = 6.0 * jax.random.normal(k3, (N2, C2), dtype=jnp.float32)
    targets2 = jax.random.randint(k4, (N2,), 0, C2, dtype=jnp.int32)
    out2m = jax.block_until_ready(
        symmetric_cross_entropy(logits2, targets2, tile_n=128))
    out2s = jax.block_until_ready(
        symmetric_cross_entropy(logits2, targets2, reduction="sum", tile_n=128))
    per2 = _reference(logits2, targets2)
    assert jnp.allclose(out2m, jnp.mean(per2), atol=1e-5, rtol=1e-5), (out2m,)
    assert jnp.allclose(out2s, jnp.sum(per2), atol=1e-3, rtol=1e-5), (out2s,)

    # Case 3: bf16 logits (cast to f32 inside the kernel), wider class dim.
    N3, C3 = 160, 40
    logits3 = (4.0 * jax.random.normal(k1, (N3, C3), dtype=jnp.float32)
               ).astype(jnp.bfloat16)
    targets3 = jax.random.randint(k2, (N3,), 0, C3, dtype=jnp.int32)
    out3 = jax.block_until_ready(
        symmetric_cross_entropy(logits3, targets3, tile_n=64))
    ref3 = jnp.mean(_reference(logits3, targets3))
    assert jnp.allclose(out3, ref3, atol=1e-4, rtol=1e-4), (out3, ref3)

    print("KERNEL_OK")
</pallas_src>

<mosaic_0001>
module attributes {stable_mosaic.version = 11 : i64} {
  func.func @_sce_kernel(%arg0: i32, %arg1: memref<24x5xf32, #tpu.memory_space<vmem>>, %arg2: memref<24x1xi32, #tpu.memory_space<vmem>>, %arg3: memref<1x8x128xf32, #tpu.memory_space<vmem>>) attributes {dimension_semantics = [#tpu.dimension_semantics<parallel>], iteration_bounds = array<i64: 1>, scalar_prefetch = 0 : i64, scratch_operands = 0 : i64, tpu.core_type = #tpu.core_type<tc>, window_params = [{transform_indices = @transform_0, window_bounds = array<i64: 24, 5>}, {transform_indices = @transform_1, window_bounds = array<i64: 24, 1>}, {transform_indices = @transform_2, window_bounds = array<i64: 1, 8, 128>}]} {
    %c0 = arith.constant 0 : index
    %c0_0 = arith.constant 0 : index
    %0 = vector.load %arg1[%c0, %c0_0] : memref<24x5xf32, #tpu.memory_space<vmem>>, vector<24x5xf32>
    %c0_1 = arith.constant 0 : index
    %c0_2 = arith.constant 0 : index
    %1 = vector.load %arg2[%c0_1, %c0_2] : memref<24x1xi32, #tpu.memory_space<vmem>>, vector<24x1xi32>
    %cst = arith.constant dense<0xFF800000> : vector<24xf32>
    %2 = vector.multi_reduction <maximumf>, %0, %cst [1] : vector<24x5xf32> to vector<24xf32>
    %3 = vector.shape_cast %2 : vector<24xf32> to vector<24x1xf32>
    %4 = vector.broadcast %3 : vector<24x1xf32> to vector<24x5xf32>
    %5 = arith.subf %0, %4 : vector<24x5xf32>
    %6 = math.exp %5 : vector<24x5xf32>
    %cst_3 = arith.constant dense<0.000000e+00> : vector<24xf32>
    %7 = vector.multi_reduction <add>, %6, %cst_3 [1] : vector<24x5xf32> to vector<24xf32>
    %8 = vector.shape_cast %7 : vector<24xf32> to vector<24x1xf32>
    %9 = tpu.iota {dimensions = array<i32: 1>} : vector<24x5xi32>
    %10 = vector.broadcast %1 : vector<24x1xi32> to vector<24x5xi32>
    %11 = arith.cmpi eq, %9, %10 : vector<24x5xi32>
    %cst_4 = arith.constant 0.000000e+00 : f32
    %12 = vector.broadcast %cst_4 : f32 to vector<24x5xf32>
    %13 = arith.select %11, %5, %12 : vector<24x5xi1>, vector<24x5xf32>
    %cst_5 = arith.constant dense<0.000000e+00> : vector<24xf32>
    %14 = vector.multi_reduction <add>, %13, %cst_5 [1] : vector<24x5xf32> to vector<24xf32>
    %15 = vector.shape_cast %14 : vector<24xf32> to vector<24x1xf32>
    %16 = math.log %8 : vector<24x1xf32>
    %17 = arith.subf %16, %15 : vector<24x1xf32>
    %cst_6 = arith.constant 0.000000e+00 : f32
    %cst_7 = arith.constant 16.1180954 : f32
    %18 = vector.broadcast %cst_6 : f32 to vector<24x1xf32>
    %19 = arith.maximumf %18, %17 : vector<24x1xf32>
    %20 = vector.broadcast %cst_7 : f32 to vector<24x1xf32>
    %21 = arith.minimumf %20, %19 : vector<24x1xf32>
    %cst_8 = arith.constant 1.000000e-01 : f32
    %22 = vector.broadcast %cst_8 : f32 to vector<24x1xf32>
    %23 = arith.mulf %22, %17 : vector<24x1xf32>
    %cst_9 = arith.constant 1.000000e+00 : f32
    %24 = vector.broadcast %cst_9 : f32 to vector<24x1xf32>
    %25 = arith.mulf %24, %21 : vector<24x1xf32>
    %26 = arith.addf %23, %25 : vector<24x1xf32>
    %27 = tpu.iota {dimensions = array<i32: 0>} : vector<24x1xi32>
    %c24_i32 = arith.constant 24 : i32
    %28 = arith.muli %arg0, %c24_i32 : i32
    %29 = vector.broadcast %28 : i32 to vector<24x1xi32>
    %30 = arith.addi %27, %29 : vector<24x1xi32>
    %c20_i32 = arith.constant 20 : i32
    %31 = vector.broadcast %c20_i32 : i32 to vector<24x1xi32>
    %32 = arith.cmpi slt, %30, %31 : vector<24x1xi32>
    %cst_10 = arith.constant 0.000000e+00 : f32
    %33 = vector.broadcast %cst_10 : f32 to vector<24x1xf32>
    %34 = arith.select %32, %26, %33 : vector<24x1xi1>, vector<24x1xf32>
    %35 = vector.shape_cast %34 : vector<24x1xf32> to vector<1x24x1xf32>
    %cst_11 = arith.constant dense<0.000000e+00> : vector<1xf32>
    %36 = vector.multi_reduction <add>, %35, %cst_11 [1, 2] : vector<1x24x1xf32> to vector<1xf32>
    %37 = vector.shape_cast %36 : vector<1xf32> to vector<1x1x1xf32>
    %38 = vector.extract %37[0, 0, 0] : f32 from vector<1x1x1xf32>
    %39 = vector.broadcast %38 : f32 to vector<1x8x128xf32>
    %c0_12 = arith.constant 0 : index
    %c0_13 = arith.constant 0 : index
    %c0_14 = arith.constant 0 : index
    %40 = vector.load %arg3[%c0_12, %c0_13, %c0_14] : memref<1x8x128xf32, #tpu.memory_space<vmem>>, vector<1x8x128xf32>
    tpu.vector_store %arg3[%c0_12, %c0_13, %c0_14], %39 {strides = array<i32>} : memref<1x8x128xf32, #tpu.memory_space<vmem>>, vector<1x8x128xf32>,
    return
  }
  func.func @transform_0(%arg0: i32) -> (i32, i32) {
    %c0_i32 = arith.constant 0 : i32
    %c0_i32_0 = arith.constant 0 : i32
    return %arg0, %c0_i32 : i32, i32
  }
  func.func @transform_1(%arg0: i32) -> (i32, i32) {
    %c0_i32 = arith.constant 0 : i32
    %c0_i32_0 = arith.constant 0 : i32
    return %arg0, %c0_i32 : i32, i32
  }
  func.func @transform_2(%arg0: i32) -> (i32, i32, i32) {
    %c0_i32 = arith.constant 0 : i32
    %c0_i32_0 = arith.constant 0 : i32
    %c0_i32_1 = arith.constant 0 : i32
    return %arg0, %c0_i32, %c0_i32_0 : i32, i32, i32
  }
}

</mosaic_0001>

<llo_original>
// kernel: tpu_custom_call.1
$region0: #{tpu_custom_call.1}
  #allocation0 [shape = 'u32[]', space=smem, size = 0x4, offset = 0x4, fixed_abs, tag = 'smem constant byte address 0x4 - core index']
  #allocation1 [shape = 'u32[144,128]{1,0:T(1,128)}', space=vmem, size = 0x12000, scoped, tag = 'internal scratch']
  %s0 = inlined_call_operand.vmem [shape: f32[20,5], index: 0, kind: input, shape index: {}]
  %s1 = inlined_call_operand.vmem [shape: s32[20,1], index: 1, kind: input, shape index: {}]
  %s2 = inlined_call_operand.hbm [shape: f32[1,8,128], index: 2, kind: output, shape index: {}]
  %s3 = sld [smem:[#allocation0]]
  $region18: #{tpu_custom_call.1} parent=0
    _
  %s5 = ssub.s32 1, %s3
  %s6 = scalar_select 0, %s5, %s3
  $region1: #{tpu_custom_call.1} parent=0
    #allocation2 [shape = 'u8[4096]{0}', space=vmem, size = 0x1000, scoped, tag = 'output window, operand 0, single buffered']
    #allocation3 [shape = 's32[1]{0}', space=sflag, size = 0x4, scoped, tag = 'scoped memory for tpu_custom_call.1']
    %7 = vsyncpa [#allocation3], 0
    // Predicated region
    $region2: #{tpu_custom_call.1} parent=1 // pred_check
      _
    $region3: #{tpu_custom_call.1} parent=1 // pred_check_branch
      %9 = sbr.rel (0) target = $region5
    $region4: #{tpu_custom_call.1} parent=1 // pred_region
      _
    $region5: #{tpu_custom_call.1} parent=1 // pred_fallthru
      _
    // Predicated region
    $region6: #{tpu_custom_call.1} parent=1 // pred_check
      _
    $region7: #{tpu_custom_call.1} parent=1 // pred_check_branch
      %11 = sbr.rel (0) target = $region9
    $region8: #{tpu_custom_call.1} parent=1 // pred_region
      _
    $region9: #{tpu_custom_call.1} parent=1 // pred_fallthru
      _
    %v12 = vld [vmem:[%s0] sm:$0xff]
    %v13 = vld [vmem:[%s0 + $0x8] sm:$0xff]
    %v14 = vld [vmem:[%s0 + $0x10] sm:$0xff]
    %v15 = vld [vmem:[%s1] sm:$0xff]
    %v16 = vld [vmem:[%s1 + $0x8] sm:$0xff]
    %v17 = vld [vmem:[%s1 + $0x10] sm:$0xff]
    %vm18 = vcmask 39936
    %v19 = vsel %vm18, %v12, -inf
    %20 = vmax.xlane.f32.xlu0 %v19
    %v21 = vpop.xlane.xlu0 %20
    %v22 = vsel %vm18, %v13, -inf
    %23 = vmax.xlane.f32.xlu0 %v22
    %v24 = vpop.xlane.xlu0 %23
    %v25 = vsel %vm18, %v14, -inf
    %26 = vmax.xlane.f32.xlu0 %v25
    %v27 = vpop.xlane.xlu0 %26
    %v28 = vsub.f32 %v12, %v21
    %v29 = vsub.f32 %v13, %v24
    %v30 = vsub.f32 %v14, %v27
    %v31 = vmul.f32 %v28, 1.442695
    %v32 = vpow.pop %v31
    %v33 = vmul.f32 %v29, 1.442695
    %v34 = vpow.pop %v33
    %v35 = vmul.f32 %v30, 1.442695
    %v36 = vpow.pop %v35
    %v37 = vsel %vm18, %v32, 0.0
    %38 = vadd.xlane.f32.xlu0 %v37
    %v39 = vpop.xlane.xlu0 %38
    %v40 = vsel %vm18, %v34, 0.0
    %41 = vadd.xlane.f32.xlu0 %v40
    %v42 = vpop.xlane.xlu0 %41
    %v43 = vsel %vm18, %v36, 0.0
    %44 = vadd.xlane.f32.xlu0 %v43
    %v45 = vpop.xlane.xlu0 %44
    %v46 = vlaneseq
    %v47 = vand.u32 %v46, 127
    %48 = vset.pattern.permute.xlu0 0
    %49 = vperm.xlu0 %48, %v15
    %v50 = vpop.permute.xlu0 %49
    %51 = vset.pattern.permute.xlu0 0
    %52 = vperm.xlu0 %51, %v16
    %v53 = vpop.permute.xlu0 %52
    %54 = vset.pattern.permute.xlu0 0
    %55 = vperm.xlu0 %54, %v17
    %v56 = vpop.permute.xlu0 %55
    %vm57 = vcmp.eq.s32.totalorder %v47, %v50
    %vm58 = vcmp.eq.s32.totalorder %v47, %v53
    %vm59 = vcmp.eq.s32.totalorder %v47, %v56
    %v60 = vsel %vm57, %v28, 0.0
    %v61 = vsel %vm58, %v29, 0.0
    %v62 = vsel %vm59, %v30, 0.0
    %v63 = vsel %vm18, %v60, 0.0
    %64 = vadd.xlane.f32.xlu0 %v63
    %v65 = vpop.xlane.xlu0 %64
    %v66 = vsel %vm18, %v61, 0.0
    %67 = vadd.xlane.f32.xlu0 %v66
    %v68 = vpop.xlane.xlu0 %67
    %v69 = vsel %vm18, %v62, 0.0
    %70 = vadd.xlane.f32.xlu0 %v69
    %v71 = vpop.xlane.xlu0 %70
    %v72 = vlog2.pop %v39
    %v73 = vmul.f32 %v72, 0.6931472
    %v74 = vlog2.pop %v42
    %v75 = vmul.f32 %v74, 0.6931472
    %v76 = vlog2.pop %v45
    %v77 = vmul.f32 %v76, 0.6931472
    %v78 = vsub.f32 %v73, %v65
    %v79 = vsub.f32 %v75, %v68
    %v80 = vsub.f32 %v77, %v71
    %v81 = vmax.f32 %v78, 0.0
    %v82 = vmax.f32 %v79, 0.0
    %v83 = vmax.f32 %v80, 0.0
    %v84 = vmin.f32 %v81, 16.118095
    %v85 = vmin.f32 %v82, 16.118095
    %v86 = vmin.f32 %v83, 16.118095
    %v87 = vmul.f32 %v78, 0.1
    %v88 = vmul.f32 %v79, 0.1
    %v89 = vmul.f32 %v80, 0.1
    %v90 = vadd.f32 %v87, %v84
    %v91 = vadd.f32 %v88, %v85
    %v92 = vadd.f32 %v89, %v86
    %v93 = vlaneseq
    %v94 = vshrl.u32 %v93, 7
    %v95 = vadd.s32 %v94, 8
    %v96 = vadd.s32 %v94, 16
    %s97 = smul.u32 0, 24
    %v98 = vstv %s97
    %v99 = vadd.s32 %v94, %v98
    %v100 = vadd.s32 %v95, %v98
    %v101 = vadd.s32 %v96, %v98
    %vm102 = vcmp.lt.s32.totalorder %v99, 20
    %vm103 = vcmp.lt.s32.totalorder %v100, 20
    %vm104 = vcmp.lt.s32.totalorder %v101, 20
    %v105 = vsel %vm102, %v90, 0.0
    %v106 = vsel %vm103, %v91, 0.0
    %v107 = vsel %vm104, %v92, 0.0
    %vm108 = vcmask 7168
    %v109 = vsel %vm108, %v105, 0.0
    %v110 = vsel %vm108, %v106, 0.0
    %v111 = vadd.f32 %v109, %v110
    %v112 = vsel %vm108, %v107, 0.0
    %v113 = vadd.f32 %v111, %v112
    %114 = vadd.xlane.f32.xlu0 %v113
    %v115 = vpop.xlane.xlu0 %114
    %v116 = vrot.slane %v115, 4
    %v117 = vadd.f32 %v115, %v116
    %v118 = vrot.slane %v117, 2
    %v119 = vadd.f32 %v117, %v118
    %v120 = vrot.slane %v119, 1
    %v121 = vadd.f32 %v119, %v120
    %s122 = vtos %v121
    %v123 = vstv %s122
    %124 = vst [vmem:[#allocation2] sm:$0xff] %v123
    // Predicated region
    $region10: #{tpu_custom_call.1} parent=1 // pred_check
      _
    $region11: #{tpu_custom_call.1} parent=1 // pred_check_branch
      %126 = sbr.rel (0) target = $region13
    $region12: #{tpu_custom_call.1} parent=1 // pred_region
      %s128 = ssub.s32 128, 128
      %129 = vsyncadd [#allocation3], %s128
      %s131 = sshll.u32 [#allocation2], 4
      %s132 = int_to_ptr.vmem [resolvable:$true] %s131
      %134 = dma.vmem_to_hbm [thread:$0]  %s132, 128, %s2, [#allocation3]
    $region13: #{tpu_custom_call.1} parent=1 // pred_fallthru
      _
    // Predicated region
    $region14: #{tpu_custom_call.1} parent=1 // pred_check
      _
    $region15: #{tpu_custom_call.1} parent=1 // pred_check_branch
      %136 = sbr.rel (0) target = $region17
    $region16: #{tpu_custom_call.1} parent=1 // pred_region
      %137 = dma.done [#allocation3], 128
    $region17: #{tpu_custom_call.1} parent=1 // pred_fallthru
      _
    %138 = vsyncpa [#allocation3], 1

</llo_original>
